<compile_context>
chip_gen: v6e
topology: v6e:2x2x1
jax: 0.10.0
libtpu: 0.0.40
codegen_flags: <defaults>
</compile_context>

<pallas_src>
import functools

import jax
import jax.numpy as jnp
from jax.experimental import pallas as pl
from jax.experimental.pallas import tpu as pltpu

_LANE = 128
_SUBLANE = 8


def _round_up(n, m):
    return ((n + m - 1) // m) * m


def _head_kernel(x_ref, w1_ref, b1_ref, w2_ref, b2_ref, o_ref):
    # fc1: [tb, cin] @ [cin, n_p] -> [tb, n_p], f32 accumulation on the MXU.
    h = jnp.dot(x_ref[...], w1_ref[...], preferred_element_type=jnp.float32)
    h = jnp.maximum(h + b1_ref[...], 0.0)            # bias + ReLU in f32
    # fc2: [tb, n_p] @ [n_p, out_c] -> [tb, out_c]. N is kept narrow (=out_c),
    # so the store writes only the real logits (no padded cols, no wrapper slice).
    h = h.astype(w2_ref.dtype)                       # no-op in the f32 path
    o = jnp.dot(h, w2_ref[...], preferred_element_type=jnp.float32)
    o_ref[...] = (o + b2_ref[...]).astype(o_ref.dtype)


def prepare_head_params(w1, b1, w2, b2, *, compute_dtype=jnp.float32):
    """Pad + transpose PyTorch-layout weights ONCE (hoisted out of the per-call path).

    w1: [out_c, cin], b1: [out_c], w2: [out_c, out_c], b2: [out_c]  ->
      w1_t: [cin, n_p]    transposed, hidden dim zero-padded to a 128 multiple
      b1_p: [1, n_p]      f32, zero-padded
      w2_t: [n_p, out_c]  transposed, contraction dim zero-padded, N kept narrow
      b2_p: [1, out_c]    f32

    Zero padding is exact: padded hidden units get w=0, b=0 -> ReLU(0)=0 and the
    corresponding rows of w2_t are zero, so they contribute nothing to the logits.
    """
    out_c, cin = w1.shape
    n_p = _round_up(out_c, _LANE)
    # TODO(synk): for production-sized heads on v6e/v7x, pad n_p to a 256
    # multiple to fill the 2x256x256 MXU (128 already matches v5e).
    w1_t = jnp.zeros((cin, n_p), compute_dtype).at[:, :out_c].set(
        w1.T.astype(compute_dtype))
    b1_p = jnp.zeros((1, n_p), jnp.float32).at[0, :out_c].set(
        b1.astype(jnp.float32))
    w2_t = jnp.zeros((n_p, out_c), compute_dtype).at[:out_c, :].set(
        w2.T.astype(compute_dtype))
    b2_p = b2.astype(jnp.float32).reshape(1, out_c)
    return w1_t, b1_p, w2_t, b2_p


def _pick_batch_tile(B, tile_b):
    if B <= tile_b:
        if B > 1024:
            # >=2 grid steps so ("parallel",) can shard across both v7x TCs.
            return _round_up(pl.cdiv(B, 2), _SUBLANE)
        return B                                   # full-dim block (always legal)
    return _round_up(tile_b, _SUBLANE)


@functools.partial(jax.jit, static_argnames=("tile_b",))
def classification_head_prepared(x, w1_t, b1_p, w2_t, b2_p, *, tile_b=4096):
    """logits[B, out_c] = relu(x @ w1^T + b1) @ w2^T + b2, fused in one kernel."""
    B, cin = x.shape
    n_p = w1_t.shape[1]
    out_c = w2_t.shape[1]
    x = x.astype(w1_t.dtype)        # bf16 path halves x DMA bytes; f32: no-op

    tb = _pick_batch_tile(B, tile_b)
    grid = (pl.cdiv(B, tb),)

    # Advisory cost estimate + explicit (working-set sized) VMEM budget.
    flops = 2 * B * (cin * n_p + n_p * out_c)
    wbytes = (w1_t.size * w1_t.dtype.itemsize
              + w2_t.size * w2_t.dtype.itemsize
              + (b1_p.size + b2_p.size) * 4)
    bytes_accessed = B * cin * x.dtype.itemsize + wbytes + B * out_c * 4
    vmem_est = (2 * tb * cin * x.dtype.itemsize      # double-buffered x tiles
                + 2 * tb * out_c * 4                 # double-buffered out tiles
                + 2 * wbytes)                        # resident weights/biases
    vmem_limit = min(96 * 1024 * 1024,
                     max(16 * 1024 * 1024, vmem_est + 4 * 1024 * 1024))

    return pl.pallas_call(
        _head_kernel,
        out_shape=jax.ShapeDtypeStruct((B, out_c), jnp.float32),
        grid=grid,
        in_specs=[
            pl.BlockSpec((tb, cin), lambda i: (i, 0)),      # x: batch-tiled
            pl.BlockSpec((cin, n_p), lambda i: (0, 0)),     # w1_t: VMEM-resident
            pl.BlockSpec((1, n_p), lambda i: (0, 0)),       # b1:   VMEM-resident
            pl.BlockSpec((n_p, out_c), lambda i: (0, 0)),   # w2_t: VMEM-resident
            pl.BlockSpec((1, out_c), lambda i: (0, 0)),     # b2:   VMEM-resident
        ],
        out_specs=pl.BlockSpec((tb, out_c), lambda i: (i, 0)),
        compiler_params=pltpu.CompilerParams(
            dimension_semantics=("parallel",),
            vmem_limit_bytes=vmem_limit,
        ),
        cost_estimate=pl.CostEstimate(
            flops=flops, transcendentals=0, bytes_accessed=bytes_accessed),
    )(x, w1_t, b1_p, w2_t, b2_p)


def classification_head(x, w1, b1, w2, b2, *, tile_b=4096,
                        compute_dtype=jnp.float32):
    """Convenience wrapper (pads/transposes per call). Prefer prepare_head_params
    + classification_head_prepared when the weights are reused across calls."""
    params = prepare_head_params(w1, b1, w2, b2, compute_dtype=compute_dtype)
    return classification_head_prepared(x, *params, tile_b=tile_b)


def _init_linear(key, fan_in, fan_out):
    # Matches PyTorch nn.Linear default init: U(-1/sqrt(fan_in), 1/sqrt(fan_in))
    kw, kb = jax.random.split(key)
    bound = 1.0 / jnp.sqrt(float(fan_in))
    w = jax.random.uniform(kw, (fan_out, fan_in), jnp.float32, -bound, bound)
    b = jax.random.uniform(kb, (fan_out,), jnp.float32, -bound, bound)
    return w, b


if __name__ == "__main__":
    key = jax.random.PRNGKey(0)
    k_x, k_x2, k_fc1, k_fc2 = jax.random.split(key, 4)

    batch, in_channels, out_channels = 8, 32, 10
    x = jax.random.normal(k_x, (batch, in_channels), jnp.float32)
    w1, b1 = _init_linear(k_fc1, in_channels, out_channels)
    w2, b2 = _init_linear(k_fc2, out_channels, out_channels)

    ref = jnp.maximum(x @ w1.T + b1, 0.0) @ w2.T + b2

    # f32 path: exact (1e-5) vs. the reference.
    out = jax.block_until_ready(classification_head(x, w1, b1, w2, b2))
    assert out.shape == (batch, out_channels)
    assert jnp.allclose(out, ref, atol=1e-5, rtol=1e-5)

    # Larger batch: exercises a multi-step grid with a ragged last tile.
    big_b = 3000
    xb = jax.random.normal(k_x2, (big_b, in_channels), jnp.float32)
    refb = jnp.maximum(xb @ w1.T + b1, 0.0) @ w2.T + b2
    outb = jax.block_until_ready(classification_head(xb, w1, b1, w2, b2))
    assert outb.shape == (big_b, out_channels)
    assert jnp.allclose(outb, refb, atol=1e-5, rtol=1e-5)

    # bf16 input/weight path (f32 accumulation + f32 epilogue): looser tolerance.
    params_bf16 = prepare_head_params(w1, b1, w2, b2, compute_dtype=jnp.bfloat16)
    out_bf16 = jax.block_until_ready(classification_head_prepared(x, *params_bf16))
    assert out_bf16.shape == (batch, out_channels)
    assert jnp.allclose(out_bf16, ref, atol=1e-1, rtol=1e-1)

    print("KERNEL_OK")
</pallas_src>

<mosaic_0001>
module attributes {stable_mosaic.version = 11 : i64} {
  func.func @_head_kernel(%arg0: i32, %arg1: memref<8x32xf32, #tpu.memory_space<vmem>>, %arg2: memref<32x128xf32, #tpu.memory_space<vmem>>, %arg3: memref<1x128xf32, #tpu.memory_space<vmem>>, %arg4: memref<128x10xf32, #tpu.memory_space<vmem>>, %arg5: memref<1x10xf32, #tpu.memory_space<vmem>>, %arg6: memref<8x10xf32, #tpu.memory_space<vmem>>) attributes {dimension_semantics = [#tpu.dimension_semantics<parallel>], iteration_bounds = array<i64: 1>, scalar_prefetch = 0 : i64, scratch_operands = 0 : i64, tpu.core_type = #tpu.core_type<tc>, window_params = [{transform_indices = @transform_0, window_bounds = array<i64: 8, 32>}, {pipeline_mode = #tpu.pipeline_mode<synchronous>, transform_indices = @transform_1, window_bounds = array<i64: 32, 128>}, {pipeline_mode = #tpu.pipeline_mode<synchronous>, transform_indices = @transform_2, window_bounds = array<i64: 1, 128>}, {pipeline_mode = #tpu.pipeline_mode<synchronous>, transform_indices = @transform_3, window_bounds = array<i64: 128, 10>}, {pipeline_mode = #tpu.pipeline_mode<synchronous>, transform_indices = @transform_4, window_bounds = array<i64: 1, 10>}, {transform_indices = @transform_5, window_bounds = array<i64: 8, 10>}]} {
    %c0 = arith.constant 0 : index
    %c0_0 = arith.constant 0 : index
    %0 = vector.load %arg1[%c0, %c0_0] : memref<8x32xf32, #tpu.memory_space<vmem>>, vector<8x32xf32>
    %c0_1 = arith.constant 0 : index
    %c0_2 = arith.constant 0 : index
    %1 = vector.load %arg2[%c0_1, %c0_2] : memref<32x128xf32, #tpu.memory_space<vmem>>, vector<32x128xf32>
    %cst = arith.constant dense<0.000000e+00> : vector<8x128xf32>
    %2 = tpu.matmul %0, %1, %cst {dimension_numbers = #tpu.dot_dimension_numbers<[1], [0], [0], [1], [0, 0, 1, 1], [], []>} : vector<8x32xf32>, vector<32x128xf32>, vector<8x128xf32> -> vector<8x128xf32>
    %c0_3 = arith.constant 0 : index
    %c0_4 = arith.constant 0 : index
    %3 = vector.load %arg3[%c0_3, %c0_4] : memref<1x128xf32, #tpu.memory_space<vmem>>, vector<1x128xf32>
    %4 = vector.broadcast %3 : vector<1x128xf32> to vector<8x128xf32>
    %5 = arith.addf %2, %4 : vector<8x128xf32>
    %cst_5 = arith.constant 0.000000e+00 : f32
    %6 = vector.broadcast %cst_5 : f32 to vector<8x128xf32>
    %7 = arith.maximumf %5, %6 : vector<8x128xf32>
    %c0_6 = arith.constant 0 : index
    %c0_7 = arith.constant 0 : index
    %8 = vector.load %arg4[%c0_6, %c0_7] : memref<128x10xf32, #tpu.memory_space<vmem>>, vector<128x10xf32>
    %cst_8 = arith.constant dense<0.000000e+00> : vector<8x10xf32>
    %9 = tpu.matmul %7, %8, %cst_8 {dimension_numbers = #tpu.dot_dimension_numbers<[1], [0], [0], [1], [0, 0, 1, 1], [], []>} : vector<8x128xf32>, vector<128x10xf32>, vector<8x10xf32> -> vector<8x10xf32>
    %c0_9 = arith.constant 0 : index
    %c0_10 = arith.constant 0 : index
    %10 = vector.load %arg5[%c0_9, %c0_10] : memref<1x10xf32, #tpu.memory_space<vmem>>, vector<1x10xf32>
    %11 = vector.broadcast %10 : vector<1x10xf32> to vector<8x10xf32>
    %12 = arith.addf %9, %11 : vector<8x10xf32>
    %c0_11 = arith.constant 0 : index
    %c0_12 = arith.constant 0 : index
    %13 = vector.load %arg6[%c0_11, %c0_12] : memref<8x10xf32, #tpu.memory_space<vmem>>, vector<8x10xf32>
    tpu.vector_store %arg6[%c0_11, %c0_12], %12 {strides = array<i32>} : memref<8x10xf32, #tpu.memory_space<vmem>>, vector<8x10xf32>,
    return
  }
  func.func @transform_0(%arg0: i32) -> (i32, i32) {
    %c0_i32 = arith.constant 0 : i32
    %c0_i32_0 = arith.constant 0 : i32
    return %arg0, %c0_i32 : i32, i32
  }
  func.func @transform_1(%arg0: i32) -> (i32, i32) {
    %c0_i32 = arith.constant 0 : i32
    %c0_i32_0 = arith.constant 0 : i32
    %c0_i32_1 = arith.constant 0 : i32
    return %c0_i32, %c0_i32_0 : i32, i32
  }
  func.func @transform_2(%arg0: i32) -> (i32, i32) {
    %c0_i32 = arith.constant 0 : i32
    %c0_i32_0 = arith.constant 0 : i32
    %c0_i32_1 = arith.constant 0 : i32
    return %c0_i32, %c0_i32_0 : i32, i32
  }
  func.func @transform_3(%arg0: i32) -> (i32, i32) {
    %c0_i32 = arith.constant 0 : i32
    %c0_i32_0 = arith.constant 0 : i32
    %c0_i32_1 = arith.constant 0 : i32
    return %c0_i32, %c0_i32_0 : i32, i32
  }
  func.func @transform_4(%arg0: i32) -> (i32, i32) {
    %c0_i32 = arith.constant 0 : i32
    %c0_i32_0 = arith.constant 0 : i32
    %c0_i32_1 = arith.constant 0 : i32
    return %c0_i32, %c0_i32_0 : i32, i32
  }
  func.func @transform_5(%arg0: i32) -> (i32, i32) {
    %c0_i32 = arith.constant 0 : i32
    %c0_i32_0 = arith.constant 0 : i32
    return %arg0, %c0_i32 : i32, i32
  }
}

</mosaic_0001>

<llo_original>
// kernel: classification_head_prepared.1
$region0: #{classification_head_prepared.1}
  #allocation0 [shape = 'u32[]', space=smem, size = 0x4, offset = 0x4, fixed_abs, tag = 'smem constant byte address 0x4 - core index']
  #allocation1 [shape = 'u32[144,128]{1,0:T(1,128)}', space=vmem, size = 0x12000, scoped, tag = 'internal scratch']
  %s0 = inlined_call_operand.vmem [shape: f32[8,32], index: 0, kind: input, shape index: {}]
  %s1 = inlined_call_operand.vmem [shape: f32[32,128], index: 1, kind: input, shape index: {}]
  %s2 = inlined_call_operand.vmem [shape: f32[1,128], index: 2, kind: input, shape index: {}]
  %s3 = inlined_call_operand.vmem [shape: f32[128,10], index: 3, kind: input, shape index: {}]
  %s4 = inlined_call_operand.vmem [shape: f32[1,10], index: 4, kind: input, shape index: {}]
  %s5 = inlined_call_operand.hbm [shape: f32[8,10], index: 5, kind: output, shape index: {}]
  %s6 = sld [smem:[#allocation0]]
  $region30: #{classification_head_prepared.1} parent=0
    _
  %s8 = ssub.s32 1, %s6
  %s9 = scalar_select 0, %s8, %s6
  $region1: #{classification_head_prepared.1} parent=0
    #allocation2 [shape = 'u8[4096]{0}', space=vmem, size = 0x1000, scoped, tag = 'output window, operand 0, single buffered']
    #allocation3 [shape = 's32[1]{0}', space=sflag, size = 0x4, scoped, tag = 'scoped memory for classification_head_prepared.1']
    %10 = vsyncpa [#allocation3], 0
    // Predicated region
    $region2: #{classification_head_prepared.1} parent=1 // pred_check
      _
    $region3: #{classification_head_prepared.1} parent=1 // pred_check_branch
      %12 = sbr.rel (0) target = $region5
    $region4: #{classification_head_prepared.1} parent=1 // pred_region
      _
    $region5: #{classification_head_prepared.1} parent=1 // pred_fallthru
      _
    // Predicated region
    $region6: #{classification_head_prepared.1} parent=1 // pred_check
      _
    $region7: #{classification_head_prepared.1} parent=1 // pred_check_branch
      %14 = sbr.rel (0) target = $region9
    $region8: #{classification_head_prepared.1} parent=1 // pred_region
      _
    $region9: #{classification_head_prepared.1} parent=1 // pred_fallthru
      _
    // Predicated region
    $region10: #{classification_head_prepared.1} parent=1 // pred_check
      _
    $region11: #{classification_head_prepared.1} parent=1 // pred_check_branch
      %16 = sbr.rel (0) target = $region13
    $region12: #{classification_head_prepared.1} parent=1 // pred_region
      _
    $region13: #{classification_head_prepared.1} parent=1 // pred_fallthru
      _
    // Predicated region
    $region14: #{classification_head_prepared.1} parent=1 // pred_check
      _
    $region15: #{classification_head_prepared.1} parent=1 // pred_check_branch
      %18 = sbr.rel (0) target = $region17
    $region16: #{classification_head_prepared.1} parent=1 // pred_region
      _
    $region17: #{classification_head_prepared.1} parent=1 // pred_fallthru
      _
    // Predicated region
    $region18: #{classification_head_prepared.1} parent=1 // pred_check
      _
    $region19: #{classification_head_prepared.1} parent=1 // pred_check_branch
      %20 = sbr.rel (0) target = $region21
    $region20: #{classification_head_prepared.1} parent=1 // pred_region
      _
    $region21: #{classification_head_prepared.1} parent=1 // pred_fallthru
      _
    %v21 = vld [vmem:[%s0] sm:$0xff]
    %v22 = vld [vmem:[%s1] sm:$0xff]
    %v23 = vld [vmem:[%s1 + $0x8] sm:$0xff]
    %v24 = vld [vmem:[%s1 + $0x10] sm:$0xff]
    %v25 = vld [vmem:[%s1 + $0x18] sm:$0xff]
    %v26 = vld [vmem:[%s2] sm:$0x1]
    %v28 = vlaneseq
    %v29 = vshrl.u32 %v28, 7
    %v30 = vsub.s32 0, %v29
    %v31 = vrot.slane %v26, %v30
    %vm33 = vcmask 261120
    %v35 = vsel %vm33, %v21, 0
    %37 = vmatprep.subr.mxu0 0.0
    %38 = vmatpush1.msra.mxu0 0.0
    %39 = vmatprep.subr.mxu0 0.0
    %40 = vmatpush1.msra.mxu0 0.0
    %41 = vmatprep.subr.mxu0 0.0
    %42 = vmatpush1.msra.mxu0 0.0
    %43 = vmatprep.subr.mxu0 0.0
    %44 = vmatpush1.msra.mxu0 0.0
    %45 = vmatprep.subr.mxu0 0.0
    %46 = vmatpush1.msra.mxu0 0.0
    %47 = vmatprep.subr.mxu0 0.0
    %48 = vmatpush1.msra.mxu0 0.0
    %49 = vmatprep.subr.mxu0 0.0
    %50 = vmatpush1.msra.mxu0 0.0
    %51 = vmatprep.subr.mxu0 0.0
    %52 = vmatpush1.msra.mxu0 0.0
    %53 = vmatprep.subr.mxu0 0.0
    %54 = vmatpush1.msra.mxu0 0.0
    %55 = vmatprep.subr.mxu0 0.0
    %56 = vmatpush1.msra.mxu0 0.0
    %57 = vmatprep.subr.mxu0 0.0
    %58 = vmatpush1.msra.mxu0 0.0
    %59 = vmatprep.subr.mxu0 0.0
    %60 = vmatpush1.msra.mxu0 0.0
    %61 = vmatprep.subr.mxu0 0.0
    %62 = vmatpush1.msra.mxu0 %v25
    %63 = vmatprep.subr.mxu0 0.0
    %64 = vmatpush1.msra.mxu0 %v24
    %65 = vmatprep.subr.mxu0 0.0
    %66 = vmatpush1.msra.mxu0 %v23
    %67 = vmatprep.subr.mxu0 0.0
    %68 = vmatpush1.msra.mxu0 %v22
    %69 = vmatprep.subr.mxu0 0.0
    %70 = vmatpush2.msra.mxu0 0.0
    %71 = vmatprep.subr.mxu0 0.0
    %72 = vmatpush2.msra.mxu0 0.0
    %73 = vmatprep.subr.mxu0 0.0
    %74 = vmatpush2.msra.mxu0 0.0
    %75 = vmatprep.subr.mxu0 0.0
    %76 = vmatpush2.msra.mxu0 0.0
    %77 = vmatprep.subr.mxu0 0.0
    %78 = vmatpush2.msra.mxu0 0.0
    %79 = vmatprep.subr.mxu0 0.0
    %80 = vmatpush2.msra.mxu0 0.0
    %81 = vmatprep.subr.mxu0 0.0
    %82 = vmatpush2.msra.mxu0 0.0
    %83 = vmatprep.subr.mxu0 0.0
    %84 = vmatpush2.msra.mxu0 0.0
    %85 = vmatprep.subr.mxu0 0.0
    %86 = vmatpush2.msra.mxu0 0.0
    %87 = vmatprep.subr.mxu0 0.0
    %88 = vmatpush2.msra.mxu0 0.0
    %89 = vmatprep.subr.mxu0 0.0
    %90 = vmatpush2.msra.mxu0 0.0
    %91 = vmatprep.subr.mxu0 0.0
    %92 = vmatpush2.msra.mxu0 0.0
    %93 = vmatprep.subr.mxu0 0.0
    %94 = vmatpush2.msra.mxu0 0.0
    %95 = vmatprep.subr.mxu0 0.0
    %96 = vmatpush2.msra.mxu0 0.0
    %97 = vmatprep.subr.mxu0 0.0
    %98 = vmatpush2.msra.mxu0 0.0
    %99 = vmatprep.subr.mxu0 0.0
    %100 = vmatpush2.msra.mxu0 0.0
    %101 = vmatprep.mubr.f32.mxu0 0.0
    %102 = vmatmul.mubr.f32.gmra.mxu0 %v35
    %v103 = vpop.f32.mrf.mxu0
    %v104 = vadd.f32 %v31, %v103
    %v105 = vpop.f32.mrf.mxu0
    %106 = vdwg.mxu0
    %v107 = vmax.f32 %v104, 0.0
    %v108 = vld [vmem:[%s3] sm:$0xff]
    %v109 = vld [vmem:[%s3 + $0x8] sm:$0xff]
    %v110 = vld [vmem:[%s3 + $0x10] sm:$0xff]
    %v111 = vld [vmem:[%s3 + $0x18] sm:$0xff]
    %v112 = vld [vmem:[%s3 + $0x20] sm:$0xff]
    %v113 = vld [vmem:[%s3 + $0x28] sm:$0xff]
    %v114 = vld [vmem:[%s3 + $0x30] sm:$0xff]
    %v115 = vld [vmem:[%s3 + $0x38] sm:$0xff]
    %v116 = vld [vmem:[%s3 + $0x40] sm:$0xff]
    %v117 = vld [vmem:[%s3 + $0x48] sm:$0xff]
    %v118 = vld [vmem:[%s3 + $0x50] sm:$0xff]
    %v119 = vld [vmem:[%s3 + $0x58] sm:$0xff]
    %v120 = vld [vmem:[%s3 + $0x60] sm:$0xff]
    %v121 = vld [vmem:[%s3 + $0x68] sm:$0xff]
    %v122 = vld [vmem:[%s3 + $0x70] sm:$0xff]
    %v123 = vld [vmem:[%s3 + $0x78] sm:$0xff]
    %v124 = vld [vmem:[%s4] sm:$0x1]
    %v126 = vlaneseq
    %v127 = vshrl.u32 %v126, 7
    %v128 = vsub.s32 0, %v127
    %v129 = vrot.slane %v124, %v128
    %131 = vmatprep.subr.mxu0 0.0
    %132 = vmatpush1.msra.mxu0 %v123
    %133 = vmatprep.subr.mxu0 0.0
    %134 = vmatpush1.msra.mxu0 %v122
    %135 = vmatprep.subr.mxu0 0.0
    %136 = vmatpush1.msra.mxu0 %v121
    %137 = vmatprep.subr.mxu0 0.0
    %138 = vmatpush1.msra.mxu0 %v120
    %139 = vmatprep.subr.mxu0 0.0
    %140 = vmatpush1.msra.mxu0 %v119
    %141 = vmatprep.subr.mxu0 0.0
    %142 = vmatpush1.msra.mxu0 %v118
    %143 = vmatprep.subr.mxu0 0.0
    %144 = vmatpush1.msra.mxu0 %v117
    %145 = vmatprep.subr.mxu0 0.0
    %146 = vmatpush1.msra.mxu0 %v116
    %147 = vmatprep.subr.mxu0 0.0
    %148 = vmatpush1.msra.mxu0 %v115
    %149 = vmatprep.subr.mxu0 0.0
    %150 = vmatpush1.msra.mxu0 %v114
    %151 = vmatprep.subr.mxu0 0.0
    %152 = vmatpush1.msra.mxu0 %v113
    %153 = vmatprep.subr.mxu0 0.0
    %154 = vmatpush1.msra.mxu0 %v112
    %155 = vmatprep.subr.mxu0 0.0
    %156 = vmatpush1.msra.mxu0 %v111
    %157 = vmatprep.subr.mxu0 0.0
    %158 = vmatpush1.msra.mxu0 %v110
    %159 = vmatprep.subr.mxu0 0.0
    %160 = vmatpush1.msra.mxu0 %v109
    %161 = vmatprep.subr.mxu0 0.0
    %162 = vmatpush1.msra.mxu0 %v108
    %163 = vmatprep.subr.mxu0 0.0
    %164 = vmatpush2.msra.mxu0 0.0
    %165 = vmatprep.subr.mxu0 0.0
    %166 = vmatpush2.msra.mxu0 0.0
    %167 = vmatprep.subr.mxu0 0.0
    %168 = vmatpush2.msra.mxu0 0.0
    %169 = vmatprep.subr.mxu0 0.0
    %170 = vmatpush2.msra.mxu0 0.0
    %171 = vmatprep.subr.mxu0 0.0
    %172 = vmatpush2.msra.mxu0 0.0
    %173 = vmatprep.subr.mxu0 0.0
    %174 = vmatpush2.msra.mxu0 0.0
    %175 = vmatprep.subr.mxu0 0.0
    %176 = vmatpush2.msra.mxu0 0.0
    %177 = vmatprep.subr.mxu0 0.0
    %178 = vmatpush2.msra.mxu0 0.0
    %179 = vmatprep.subr.mxu0 0.0
    %180 = vmatpush2.msra.mxu0 0.0
    %181 = vmatprep.subr.mxu0 0.0
    %182 = vmatpush2.msra.mxu0 0.0
    %183 = vmatprep.subr.mxu0 0.0
    %184 = vmatpush2.msra.mxu0 0.0
    %185 = vmatprep.subr.mxu0 0.0
    %186 = vmatpush2.msra.mxu0 0.0
    %187 = vmatprep.subr.mxu0 0.0
    %188 = vmatpush2.msra.mxu0 0.0
    %189 = vmatprep.subr.mxu0 0.0
    %190 = vmatpush2.msra.mxu0 0.0
    %191 = vmatprep.subr.mxu0 0.0
    %192 = vmatpush2.msra.mxu0 0.0
    %193 = vmatprep.subr.mxu0 0.0
    %194 = vmatpush2.msra.mxu0 0.0
    %195 = vmatprep.mubr.f32.mxu0 0.0
    %196 = vmatmul.mubr.f32.gmra.mxu0 %v107
    %v197 = vpop.f32.mrf.mxu0
    %v198 = vadd.f32 %v129, %v197
    %v199 = vpop.f32.mrf.mxu0
    %200 = vdwg.mxu0
    %vm201 = vcmask 80896
    %202 = vst.msk [vmem:[#allocation2] sm:$0xff] %vm201, %v198
    // Predicated region
    $region22: #{classification_head_prepared.1} parent=1 // pred_check
      _
    $region23: #{classification_head_prepared.1} parent=1 // pred_check_branch
      %204 = sbr.rel (0) target = $region25
    $region24: #{classification_head_prepared.1} parent=1 // pred_region
      %s206 = ssub.s32 128, 128
      %207 = vsyncadd [#allocation3], %s206
      %s209 = sshll.u32 [#allocation2], 4
      %s210 = int_to_ptr.vmem [resolvable:$true] %s209
      %212 = dma.vmem_to_hbm [thread:$0]  %s210, 128, %s5, [#allocation3]
    $region25: #{classification_head_prepared.1} parent=1 // pred_fallthru
      _
    // Predicated region
    $region26: #{classification_head_prepared.1} parent=1 // pred_check
      _
    $region27: #{classification_head_prepared.1} parent=1 // pred_check_branch
      %214 = sbr.rel (0) target = $region29
    $region28: #{classification_head_prepared.1} parent=1 // pred_region
      %215 = dma.done [#allocation3], 128
    $region29: #{classification_head_prepared.1} parent=1 // pred_fallthru
      _
    %216 = vsyncpa [#allocation3], 1

</llo_original>
